<compile_context>
chip_gen: v5e
topology: v5e:2x2
jax: 0.10.0
libtpu: 0.0.40
codegen_flags: <defaults>
</compile_context>

<pallas_src>
import math

import jax
import jax.numpy as jnp
import numpy as np
from jax import random
from jax.experimental import pallas as pl
from jax.experimental.pallas import tpu as pltpu

try:  # scipy ships with jax; used only for the host-side f64 constant term.
    from scipy.special import gammaln as _gammaln
except ImportError:  # pragma: no cover
    _gammaln = np.vectorize(math.lgamma, otypes=[np.float64])


def _round_up(x: int, m: int) -> int:
    return ((x + m - 1) // m) * m


def _make_loss_kernel(I0: float, tk: int, x_resident: bool):
    def kernel(x_ref, a_ref, y_ref, nll_ref):
        k = pl.program_id(1)

        @pl.when(k == 0)
        def _():
            nll_ref[...] = jnp.zeros_like(nll_ref)

        # Partial projection over this K-tile of pixels (bf16 in, f32 acc).
        # The output block is resident across the k axis, so it is used
        # directly as the f32 sinogram accumulator.
        if x_resident:
            start = pl.multiple_of(k * tk, tk)
            x_tile = x_ref[:, pl.ds(start, tk)]
        else:
            x_tile = x_ref[...]
        nll_ref[...] += jnp.dot(
            x_tile, a_ref[...], preferred_element_type=jnp.float32
        )

        @pl.when(k == pl.num_programs(1) - 1)
        def _():
            sino = nll_ref[...]
            # Poisson NLL with the log folded away (log counts = log I0 - sino):
            #   counts - y*log(counts) + lgamma(y+1)
            # = counts + y*sino + (lgamma(y+1) - y*log(I0))
            # The constant last term is summed in f64 in the wrapper.
            nll_ref[...] = I0 * jnp.exp(-sino) + y_ref[...] * sino

    return kernel


def _default_tiles():
    """Generation-aware A-tile sizes (bf16): ~16 MiB on v5e/v6e, ~8 MiB on v7x."""
    try:
        cap = int(getattr(pltpu.get_tpu_info(), "vmem_capacity_bytes", 64 << 20))
    except Exception:
        cap = 64 << 20
    if cap >= (100 << 20):      # v5e / v6e: 128 MiB physical VMEM
        return 4096, 2048       # 16 MiB bf16 A tile, 32 MiB double-buffered
    return 2048, 2048           # v7x: 64 MiB physical VMEM -> 8 MiB A tile


def linear_poisson_ct_loss(
    x_HU,
    A,
    y_counts,
    *,
    I0=1e6,
    mu_water=0.02,
    tk=None,
    tn=None,
    projector_dtype=jnp.bfloat16,
    host_f64_sum=False,
):
    """Fused Pallas implementation of LinearPoissonCTLossClosure.forward.

    Note: not intended to be called under jit (the f64 constant term and the
    optional precise sum are computed on the host, matching the module's
    set_measurements-time precomputation).
    """
    B = x_HU.shape[0]
    x_flat = x_HU.reshape(B, -1).astype(jnp.float32)
    N_pix, N_rays = A.shape
    assert x_flat.shape[1] == N_pix

    itemsize = np.dtype(projector_dtype).itemsize
    sub = 16 if itemsize == 2 else 8          # sublane packing of the A dtype

    if tk is None or tn is None:
        dtk, dtn = _default_tiles()
        tk = dtk if tk is None else tk
        tn = dtn if tn is None else tn

    # Tile selection: lane-aligned k slices of x when the pixel axis is split,
    # one whole (sublane-rounded) tile otherwise.  Ray tiles stay multiples of
    # 128 (lane-dense output stores).  Non-multiple geometries are zero-padded.
    tk = min(tk, N_pix)
    if tk >= N_pix or _round_up(tk, 128) >= N_pix:
        tk = _round_up(N_pix, sub)
    else:
        tk = _round_up(tk, 128)
    tn = min(_round_up(tn, 128), _round_up(N_rays, 128))
    N_pix_pad = _round_up(N_pix, tk)
    N_rays_pad = _round_up(N_rays, tn)
    n_j = N_rays_pad // tn      # ray tiles (parallel)
    n_k = N_pix_pad // tk       # pixel/K reduction tiles (last)

    # convert_to_attenuation (linear HU -> mu) folded out of the kernel.
    # TODO(synk): an arbitrary user-supplied convert_to_attenuation callable is
    # not reproduced; the standard linear HU->mu map is applied in the wrapper.
    x_atten = (mu_water * (1.0 + x_flat / 1000.0)).astype(projector_dtype)
    if N_pix_pad != N_pix:
        x_atten = jnp.pad(x_atten, ((0, 0), (0, N_pix_pad - N_pix)))

    # A is the dominant HBM stream -> narrow dtype (bf16 by default).
    A_cast = A.astype(projector_dtype)
    if (N_pix_pad, N_rays_pad) != (N_pix, N_rays):
        A_cast = jnp.pad(
            A_cast, ((0, N_pix_pad - N_pix), (0, N_rays_pad - N_rays))
        )

    y2 = y_counts.astype(jnp.float32).reshape(B, N_rays)
    y_pad = (
        jnp.pad(y2, ((0, 0), (0, N_rays_pad - N_rays)))
        if N_rays_pad != N_rays
        else y2
    )

    # Constant Poisson-NLL term, computed once on the host in float64:
    #   sum(lgamma(y+1)) - sum(y) * log(I0)
    # (catastrophic cancellation in f32 at realistic I0 ~ 1e6).
    y_np = np.asarray(jax.device_get(y2), dtype=np.float64)
    c_sum = float(np.sum(_gammaln(y_np + 1.0)) - np.sum(y_np) * math.log(I0))

    # Keep x fully VMEM-resident (one fetch for the whole grid) when small;
    # otherwise stream it in (B, tk) tiles alongside A.
    bpad_x = _round_up(B, sub)
    bpad32 = _round_up(B, 8)
    x_resident_bytes = 2 * bpad_x * N_pix_pad * itemsize   # 2 bufs budgeted
    x_resident = x_resident_bytes <= (12 << 20)

    vmem_est = (
        2 * tk * tn * itemsize                                   # A (double-buffered, dominant)
        + 2 * bpad_x * (N_pix_pad if x_resident else tk) * itemsize  # x
        + 2 * bpad32 * tn * 4                                    # measured counts y
        + 2 * bpad32 * tn * 4                                    # per-ray NLL output / accumulator
    )
    vmem_limit = int(max(vmem_est + (4 << 20), 32 << 20))

    cost = pl.CostEstimate(
        flops=2 * B * N_pix_pad * N_rays_pad,
        transcendentals=B * N_rays_pad,
        bytes_accessed=int(
            N_pix_pad * N_rays_pad * itemsize                     # projector A (dominant)
            + (1 if x_resident else n_j) * B * N_pix_pad * itemsize
            + 2 * B * N_rays_pad * 4                              # y in, NLL out
        ),
    )

    if x_resident:
        x_spec = pl.BlockSpec((B, N_pix_pad), lambda j, k: (0, 0))
    else:
        x_spec = pl.BlockSpec((B, tk), lambda j, k: (0, k))

    nll = pl.pallas_call(
        _make_loss_kernel(float(I0), tk, x_resident),
        out_shape=jax.ShapeDtypeStruct((B, N_rays_pad), jnp.float32),
        grid_spec=pltpu.PrefetchScalarGridSpec(
            num_scalar_prefetch=0,
            grid=(n_j, n_k),  # (ray tiles [parallel], pixel reduction [last])
            in_specs=[
                x_spec,                                         # attenuation image
                pl.BlockSpec((tk, tn), lambda j, k: (k, j)),    # projector tile
                pl.BlockSpec((B, tn), lambda j, k: (0, j)),     # measured counts
            ],
            out_specs=pl.BlockSpec((B, tn), lambda j, k: (0, j)),  # per-ray NLL
        ),
        compiler_params=pltpu.CompilerParams(
            dimension_semantics=("parallel", "arbitrary"),
            vmem_limit_bytes=vmem_limit,
        ),
        cost_estimate=cost,
    )(x_atten, A_cast, y_pad)

    nll_valid = nll[:, :N_rays]
    if host_f64_sum:
        # Precise path: per-ray NLLs are ~I0-scale, so sum in f64 on the host.
        nll_host = np.asarray(jax.device_get(nll_valid), dtype=np.float64)
        return float(nll_host.sum() + c_sum)
    return jnp.sum(nll_valid) + jnp.float32(c_sum)


if __name__ == "__main__":
    key = random.PRNGKey(0)
    kx, ka = random.split(key)

    # Small shapes implied by the module (NCHW image, linear projector).
    # Deliberately NOT multiples of the tile sizes to exercise the padding path.
    B, C, H, W = 2, 1, 16, 17
    N_pix = C * H * W              # 272
    N_rays = 300
    I0 = 1e4
    mu_water = 0.02

    x_HU = random.uniform(kx, (B, C, H, W), jnp.float32, -1000.0, 1000.0)
    A = random.uniform(ka, (N_pix, N_rays), jnp.float32, 0.0, 1.0) / 16.0

    # "Measured counts": expected counts from a slightly different ground-truth
    # image (deterministic simulate_measurements; no Poisson sampling).
    # TODO(synk): torch.poisson sampling in simulate_measurements is not
    # reproduced (the forward pass does not need it).
    x_true_atten = mu_water * (1.0 + (x_HU * 0.9).reshape(B, -1) / 1000.0)
    sino_true = x_true_atten @ A
    y_counts = jnp.maximum(I0 * jnp.exp(-sino_true), 1.0)

    # float64 host reference of the module's forward (an f32 reference suffers
    # the same cancellation the kernel path avoids).
    x64 = np.asarray(x_HU, np.float64).reshape(B, -1)
    A64 = np.asarray(A, np.float64)
    y64 = np.asarray(y_counts, np.float64)
    sino64 = (mu_water * (1.0 + x64 / 1000.0)) @ A64
    counts64 = I0 * np.exp(-sino64)
    ref = float(
        np.sum(counts64 - y64 * np.log(counts64) + _gammaln(y64 + 1.0))
    )

    # 1) Explicit small tiles: exercises the 3x3 grid, padding, and the
    #    resident-x k-slicing path.
    loss_small = jax.block_until_ready(
        linear_poisson_ct_loss(
            x_HU, A, y_counts, I0=I0, mu_water=mu_water, tk=128, tn=128
        )
    )
    # 2) Generation-aware default tiles (clamped to the tiny problem).
    loss_auto = jax.block_until_ready(
        linear_poisson_ct_loss(x_HU, A, y_counts, I0=I0, mu_water=mu_water)
    )
    # 3) Host-f64 final summation (precision path recommended at I0 ~ 1e6).
    loss_precise = linear_poisson_ct_loss(
        x_HU, A, y_counts, I0=I0, mu_water=mu_water, tk=128, tn=128,
        host_f64_sum=True,
    )

    np.testing.assert_allclose(float(loss_small), ref, rtol=5e-2)
    np.testing.assert_allclose(float(loss_auto), ref, rtol=5e-2)
    np.testing.assert_allclose(float(loss_precise), ref, rtol=5e-2)
    print("KERNEL_OK")
</pallas_src>

<mosaic_0001>
module attributes {stable_mosaic.version = 11 : i64} {
  func.func @kernel(%arg0: i32, %arg1: i32, %arg2: memref<2x384xbf16, #tpu.memory_space<vmem>>, %arg3: memref<128x128xbf16, #tpu.memory_space<vmem>>, %arg4: memref<2x128xf32, #tpu.memory_space<vmem>>, %arg5: memref<2x128xf32, #tpu.memory_space<vmem>>) attributes {dimension_semantics = [#tpu.dimension_semantics<parallel>, #tpu.dimension_semantics<arbitrary>], iteration_bounds = array<i64: 3, 3>, scalar_prefetch = 0 : i64, scratch_operands = 0 : i64, tpu.core_type = #tpu.core_type<tc>, window_params = [{pipeline_mode = #tpu.pipeline_mode<synchronous>, transform_indices = @transform_0, window_bounds = array<i64: 2, 384>}, {transform_indices = @transform_1, window_bounds = array<i64: 128, 128>}, {transform_indices = @transform_2, window_bounds = array<i64: 2, 128>}, {transform_indices = @transform_3, window_bounds = array<i64: 2, 128>}]} {
    %c0_i32 = arith.constant 0 : i32
    %0 = arith.cmpi eq, %arg1, %c0_i32 : i32
    %1 = arith.extui %0 : i1 to i32
    %c0_i32_0 = arith.constant 0 : i32
    %2 = arith.cmpi ne, %1, %c0_i32_0 : i32
    scf.if %2 {
      %cst_8 = arith.constant 0.000000e+00 : f32
      %15 = vector.broadcast %cst_8 : f32 to vector<2x128xf32>
      %c0_9 = arith.constant 0 : index
      %c0_10 = arith.constant 0 : index
      %16 = vector.load %arg5[%c0_9, %c0_10] : memref<2x128xf32, #tpu.memory_space<vmem>>, vector<2x128xf32>
      tpu.vector_store %arg5[%c0_9, %c0_10], %15 {strides = array<i32>} : memref<2x128xf32, #tpu.memory_space<vmem>>, vector<2x128xf32>,
    } else {
    }
    %c128_i32 = arith.constant 128 : i32
    %3 = arith.muli %arg1, %c128_i32 : i32
    %4 = tpu.assume_multiple %3, 128 : i32
    %c0 = arith.constant 0 : index
    %5 = arith.index_cast %4 : i32 to index
    %6 = vector.load %arg2[%c0, %5] : memref<2x384xbf16, #tpu.memory_space<vmem>>, vector<2x128xbf16>
    %c0_1 = arith.constant 0 : index
    %c0_2 = arith.constant 0 : index
    %7 = vector.load %arg5[%c0_1, %c0_2] : memref<2x128xf32, #tpu.memory_space<vmem>>, vector<2x128xf32>
    %c0_3 = arith.constant 0 : index
    %c0_4 = arith.constant 0 : index
    %8 = vector.load %arg3[%c0_3, %c0_4] : memref<128x128xbf16, #tpu.memory_space<vmem>>, vector<128x128xbf16>
    %cst = arith.constant dense<0.000000e+00> : vector<2x128xf32>
    %9 = tpu.matmul %6, %8, %cst {dimension_numbers = #tpu.dot_dimension_numbers<[1], [0], [0], [1], [0, 0, 1, 1], [], []>} : vector<2x128xbf16>, vector<128x128xbf16>, vector<2x128xf32> -> vector<2x128xf32>
    %10 = arith.addf %7, %9 : vector<2x128xf32>
    %c0_5 = arith.constant 0 : index
    %c0_6 = arith.constant 0 : index
    %11 = vector.load %arg5[%c0_5, %c0_6] : memref<2x128xf32, #tpu.memory_space<vmem>>, vector<2x128xf32>
    tpu.vector_store %arg5[%c0_5, %c0_6], %10 {strides = array<i32>} : memref<2x128xf32, #tpu.memory_space<vmem>>, vector<2x128xf32>,
    %c2_i32 = arith.constant 2 : i32
    %12 = arith.cmpi eq, %arg1, %c2_i32 : i32
    %13 = arith.extui %12 : i1 to i32
    %c0_i32_7 = arith.constant 0 : i32
    %14 = arith.cmpi ne, %13, %c0_i32_7 : i32
    scf.if %14 {
      %c0_8 = arith.constant 0 : index
      %c0_9 = arith.constant 0 : index
      %15 = vector.load %arg5[%c0_8, %c0_9] : memref<2x128xf32, #tpu.memory_space<vmem>>, vector<2x128xf32>
      %cst_10 = arith.constant 0.000000e+00 : f32
      %16 = vector.broadcast %cst_10 : f32 to vector<2x128xf32>
      %17 = arith.subf %16, %15 : vector<2x128xf32>
      %18 = math.exp %17 : vector<2x128xf32>
      %cst_11 = arith.constant 1.000000e+04 : f32
      %19 = vector.broadcast %cst_11 : f32 to vector<2x128xf32>
      %20 = arith.mulf %19, %18 : vector<2x128xf32>
      %c0_12 = arith.constant 0 : index
      %c0_13 = arith.constant 0 : index
      %21 = vector.load %arg4[%c0_12, %c0_13] : memref<2x128xf32, #tpu.memory_space<vmem>>, vector<2x128xf32>
      %22 = arith.mulf %21, %15 : vector<2x128xf32>
      %23 = arith.addf %20, %22 : vector<2x128xf32>
      %c0_14 = arith.constant 0 : index
      %c0_15 = arith.constant 0 : index
      %24 = vector.load %arg5[%c0_14, %c0_15] : memref<2x128xf32, #tpu.memory_space<vmem>>, vector<2x128xf32>
      tpu.vector_store %arg5[%c0_14, %c0_15], %23 {strides = array<i32>} : memref<2x128xf32, #tpu.memory_space<vmem>>, vector<2x128xf32>,
    } else {
    }
    return
  }
  func.func @transform_0(%arg0: i32, %arg1: i32) -> (i32, i32) {
    %c0_i32 = arith.constant 0 : i32
    %c0_i32_0 = arith.constant 0 : i32
    %c0_i32_1 = arith.constant 0 : i32
    return %c0_i32, %c0_i32_0 : i32, i32
  }
  func.func @transform_1(%arg0: i32, %arg1: i32) -> (i32, i32) {
    %c0_i32 = arith.constant 0 : i32
    return %arg1, %arg0 : i32, i32
  }
  func.func @transform_2(%arg0: i32, %arg1: i32) -> (i32, i32) {
    %c0_i32 = arith.constant 0 : i32
    %c0_i32_0 = arith.constant 0 : i32
    return %c0_i32, %arg0 : i32, i32
  }
  func.func @transform_3(%arg0: i32, %arg1: i32) -> (i32, i32) {
    %c0_i32 = arith.constant 0 : i32
    %c0_i32_0 = arith.constant 0 : i32
    return %c0_i32, %arg0 : i32, i32
  }
}

</mosaic_0001>

<llo_original>
// kernel: tpu_custom_call.1
$region0: #{tpu_custom_call.1}
  #allocation0 [shape = 'u32[]', space=smem, size = 0x4, offset = 0x4, fixed_abs, tag = 'smem constant byte address 0x4 - core index']
  #allocation1 [shape = 'u32[72,128]{1,0:T(1,128)}', space=vmem, size = 0x9000, scoped, tag = 'internal scratch']
  %s0 = inlined_call_operand.hbm [shape: bf16[2,384], index: 0, kind: input, shape index: {}]
  %s1 = inlined_call_operand.hbm [shape: bf16[384,384], index: 1, kind: input, shape index: {}]
  %s2 = inlined_call_operand.hbm [shape: f32[2,384], index: 2, kind: input, shape index: {}]
  %s3 = inlined_call_operand.hbm [shape: f32[2,384], index: 3, kind: output, shape index: {}]
  %s4 = sld [smem:[#allocation0]]
  $region65: #{tpu_custom_call.1} parent=0
    _
  %s6 = ssub.s32 1, %s4
  %s7 = scalar_select 0, %s6, %s4
  $region1: #{tpu_custom_call.1} parent=0
    #allocation2 [shape = 'u8[1536]{0}', space=vmem, size = 0x800, scoped, tag = 'input window, operand 0, single buffered']
    #allocation3 [shape = 's32[2]{0}', space=sflag, size = 0x8, scoped, tag = 'scoped memory for tpu_custom_call.1']
    #allocation4 [shape = 's32[2]{0}', space=sflag, size = 0x8, scoped, tag = 'scoped memory for tpu_custom_call.1']
    #allocation5 [shape = 'u8[65536]{0}', space=vmem, size = 0x10000, scoped, tag = 'input window, operand 1']
    #allocation6 [shape = 's32[2]{0}', space=sflag, size = 0x8, scoped, tag = 'scoped memory for tpu_custom_call.1']
    #allocation7 [shape = 'u8[2048]{0}', space=vmem, size = 0x800, scoped, tag = 'input window, operand 2']
    #allocation8 [shape = 'u8[2048]{0}', space=vmem, size = 0x800, scoped, tag = 'output window, operand 0']
    %8 = vsyncpa [#allocation3], 0
    %9 = vsyncpa [#allocation6], 0
    %s10 = scalar_lea.sflag [#allocation6], 1
    %11 = vsyncpa %s10, 0
    %12 = vsyncpa [#allocation4], 0
    %s13 = scalar_lea.sflag [#allocation4], 1
    %14 = vsyncpa %s13, 0
    loop: start=0, step=1, limit=11
    $region2: #{tpu_custom_call.1} parent=1 // loop_pre_header
      _
    $region3: #{tpu_custom_call.1} parent=1 // loop_header
      %s16 = sphi 0, %s20
      %p17 = scmp.ge.s32.totalorder %s16, 11
      %s23 = sphi 0, %s35
      %s24 = sphi 0, %s31
      %s25 = sphi 0, %s23
      %s26 = sphi 0, %s24
      %s27 = sphi 0, %s25
      %s28 = sphi 0, %s26
      %s36 = sphi 0, %s36
      %s38 = sphi 0, %s36
      %s39 = sphi 0, %s38
      %s53 = sphi 0, %s39
      %s61 = sphi 0, %s63
      %s64 = sphi 0, %s61
      %s65 = sphi 0, %s64
      %s81 = sphi 0, %s65
      %s87 = sphi 0, %s89
      %s90 = sphi 0, %s87
      %s91 = sphi 0, %s90
      %s107 = sphi 0, %s91
      %s113 = sphi 0, %s115
      %s116 = sphi 0, %s113
      %s117 = sphi 0, %s116
      %s133 = sphi 0, %s117
    $region4: #{tpu_custom_call.1} parent=1 // loop_header_branch
      %19 = sbr.rel (%p17) target = $region8
    $region5: #{tpu_custom_call.1} parent=1 // loop_body
      %s21 = ssub.s32 %s16, 1
      %s22 = ssub.s32 %s16, 2
      %s29 = sadd.s32 1, %s24
      %p30 = scmp.ge.s32.totalorder %s29, 3
      %s31 = scalar_select %p30, 0, %s29
      %s32 = sadd.s32 1, %s23
      %s33 = scalar_select %p30, %s32, %s23
      %p34 = scmp.ge.s32.totalorder %s33, 3
      %s35 = scalar_select %p34, 0, %s33
      %s37 = sadd.s32 %s36, 1
      %p40 = scmp.eq.s32.totalorder %s16, 8
      %p41 = scmp.ne.s32.totalorder %s36, %s38
      %p42 = scmp.eq.s32.totalorder %s16, 0
      %p43 = por %p41, %p42
      %p44 = scmp.ne.s32.totalorder %s36, %s38
      %p45 = scmp.eq.s32.totalorder %s21, 8
      %p46 = por %p44, %p45
      %p47 = scmp.ne.s32.totalorder %s38, %s39
      %p48 = scmp.eq.s32.totalorder %s21, 0
      %p49 = por %p47, %p48
      %p50 = scmp.ne.s32.totalorder %s38, %s39
      %p51 = scmp.eq.s32.totalorder %s22, 8
      %p52 = por %p50, %p51
      %p54 = scmp.ne.s32.totalorder %s39, %s53
      %p55 = scmp.eq.s32.totalorder %s22, 0
      %p56 = por %p54, %p55
      %s57 = ssub.s32 %s24, %s31
      %s58 = ssub.s32 %s23, %s35
      %s59 = sor.u32 %s57, %s58
      %p60 = scmp.eq.s32.totalorder %s59, 0
      %s62 = sadd.s32 %s61, 1
      %s63 = scalar_select %p60, %s61, %s62
      %p66 = pneg %p60
      %p67 = scmp.eq.s32.totalorder %s16, 8
      %p68 = por %p66, %p67
      %p69 = scmp.ne.s32.totalorder %s61, %s64
      %p70 = scmp.eq.s32.totalorder %s16, 0
      %p71 = por %p69, %p70
      %p72 = scmp.ne.s32.totalorder %s61, %s64
      %p73 = scmp.eq.s32.totalorder %s21, 8
      %p74 = por %p72, %p73
      %p75 = scmp.ne.s32.totalorder %s64, %s65
      %p76 = scmp.eq.s32.totalorder %s21, 0
      %p77 = por %p75, %p76
      %p78 = scmp.ne.s32.totalorder %s64, %s65
      %p79 = scmp.eq.s32.totalorder %s22, 8
      %p80 = por %p78, %p79
      %p82 = scmp.ne.s32.totalorder %s65, %s81
      %p83 = scmp.eq.s32.totalorder %s22, 0
      %p84 = por %p82, %p83
      %s85 = ssub.s32 %s23, %s35
      %p86 = scmp.eq.s32.totalorder %s85, 0
      %s88 = sadd.s32 %s87, 1
      %s89 = scalar_select %p86, %s87, %s88
      %p92 = pneg %p86
      %p93 = scmp.eq.s32.totalorder %s16, 8
      %p94 = por %p92, %p93
      %p95 = scmp.ne.s32.totalorder %s87, %s90
      %p96 = scmp.eq.s32.totalorder %s16, 0
      %p97 = por %p95, %p96
      %p98 = scmp.ne.s32.totalorder %s87, %s90
      %p99 = scmp.eq.s32.totalorder %s21, 8
      %p100 = por %p98, %p99
      %p101 = scmp.ne.s32.totalorder %s90, %s91
      %p102 = scmp.eq.s32.totalorder %s21, 0
      %p103 = por %p101, %p102
      %p104 = scmp.ne.s32.totalorder %s90, %s91
      %p105 = scmp.eq.s32.totalorder %s22, 8
      %p106 = por %p104, %p105
      %p108 = scmp.ne.s32.totalorder %s91, %s107
      %p109 = scmp.eq.s32.totalorder %s22, 0
      %p110 = por %p108, %p109
      %s111 = ssub.s32 %s23, %s35
      %p112 = scmp.eq.s32.totalorder %s111, 0
      %s114 = sadd.s32 %s113, 1
      %s115 = scalar_select %p112, %s113, %s114
      %p118 = pneg %p112
      %p119 = scmp.eq.s32.totalorder %s16, 8
      %p120 = por %p118, %p119
      %p121 = scmp.ne.s32.totalorder %s113, %s116
      %p122 = scmp.eq.s32.totalorder %s16, 0
      %p123 = por %p121, %p122
      %p124 = scmp.ne.s32.totalorder %s113, %s116
      %p125 = scmp.eq.s32.totalorder %s21, 8
      %p126 = por %p124, %p125
      %p127 = scmp.ne.s32.totalorder %s116, %s117
      %p128 = scmp.eq.s32.totalorder %s21, 0
      %p129 = por %p127, %p128
      %p130 = scmp.ne.s32.totalorder %s116, %s117
      %p131 = scmp.eq.s32.totalorder %s22, 8
      %p132 = por %p130, %p131
      %p134 = scmp.ne.s32.totalorder %s117, %s133
      %p135 = scmp.eq.s32.totalorder %s22, 0
      %p136 = por %p134, %p135
      %p137 = scmp.le.s32.totalorder 1, %s16
      %p138 = scmp.lt.s32.totalorder %s16, 10
      %p139 = pnand %p137, %p138
      %p140 = pneg %p139
      // Predicated region
      $region9: #{tpu_custom_call.1} parent=5 // pred_check
        _
      $region10: #{tpu_custom_call.1} parent=5 // pred_check_branch
        %142 = sbr.rel (%p139) target = $region12
      $region11: #{tpu_custom_call.1} parent=5 // pred_region
        %s143 = ssub.s32 %s16, 1
        // Predicated region
        $region13: #{tpu_custom_call.1} parent=11 // pred_check
          %p144 = pneg %p49
        $region14: #{tpu_custom_call.1} parent=11 // pred_check_branch
          %146 = sbr.rel (%p144) target = $region16
        $region15: #{tpu_custom_call.1} parent=11 // pred_region
          %148 = vsyncadd [#allocation3], 0
          %s150 = sshll.u32 %s0, 4
          %s151 = int_to_ptr.hbm [resolvable:$true] %s150
          %s152 = sshll.u32 [#allocation2], 4
          %s153 = int_to_ptr.vmem [resolvable:$true] %s152
          %155 = dma.hbm_to_vmem [thread:$0]  %s151, 48, %s153, [#allocation3]
        $region16: #{tpu_custom_call.1} parent=11 // pred_fallthru
          _
      $region12: #{tpu_custom_call.1} parent=5 // pred_fallthru
        _
      %p156 = scmp.lt.s32.totalorder %s16, 9
      // Predicated region
      $region17: #{tpu_custom_call.1} parent=5 // pred_check
        %p157 = pneg %p156
      $region18: #{tpu_custom_call.1} parent=5 // pred_check_branch
        %159 = sbr.rel (%p157) target = $region20
      $region19: #{tpu_custom_call.1} parent=5 // pred_region
        // Predicated region
        $region21: #{tpu_custom_call.1} parent=19 // pred_check
          %p160 = pneg %p71
        $region22: #{tpu_custom_call.1} parent=19 // pred_check_branch
          %162 = sbr.rel (%p160) target = $region24
        $region23: #{tpu_custom_call.1} parent=19 // pred_region
          %s163 = sand.u32 %s16, 1
          %s164 = scalar_lea.sflag [#allocation6], %s163
          %s165 = sand.u32 %s61, 1
          %s166 = smul.addr %s165, 64
          %s167 = scalar_lea.vmem [#allocation5], %s166
          %s168 = smul.u32 16, %s24
          %170 = vsyncadd %s164, 0
          %s171 = smul.addr %s168, 3
          %s172 = sadd.s32 %s23, %s171
          %s173 = smul.addr %s172, 4
          %s174 = scalar_lea.hbm %s1, %s173
          %s175 = sshll.u32 %s174, 4
          %s176 = int_to_ptr.hbm [resolvable:$true] %s175
          %s177 = sshll.u32 %s167, 4
          %s178 = int_to_ptr.vmem [resolvable:$true] %s177
          %183 = dma.hbm_to_vmem [thread:$0]  %s176, 1024, %s178, %s164, 192, 64, 4
        $region24: #{tpu_custom_call.1} parent=19 // pred_fallthru
          _
        // Predicated region
        $region25: #{tpu_custom_call.1} parent=19 // pred_check
          %p184 = pneg %p97
        $region26: #{tpu_custom_call.1} parent=19 // pred_check_branch
          %186 = sbr.rel (%p184) target = $region28
        $region27: #{tpu_custom_call.1} parent=19 // pred_region
          %s187 = sand.u32 %s16, 1
          %s188 = scalar_lea.sflag [#allocation6], %s187
          %s189 = sand.u32 %s87, 1
          %s190 = smul.addr %s189, 2
          %s191 = scalar_lea.vmem [#allocation7], %s190
          %193 = vsyncadd %s188, 0
          %s194 = smul.addr %s23, 2
          %s195 = scalar_lea.hbm %s2, %s194
          %s197 = sshll.u32 %s195, 4
          %s198 = int_to_ptr.hbm [resolvable:$true] %s197
          %s199 = sshll.u32 %s191, 4
          %s200 = int_to_ptr.vmem [resolvable:$true] %s199
          %202 = dma.hbm_to_vmem [thread:$0]  %s198, 32, %s200, %s188
        $region28: #{tpu_custom_call.1} parent=19 // pred_fallthru
          _
      $region20: #{tpu_custom_call.1} parent=5 // pred_fallthru
        _
      %p203 = scmp.le.s32.totalorder 1, %s16
      %p204 = scmp.lt.s32.totalorder %s16, 10
      %p205 = pnand %p203, %p204
      %p206 = pneg %p205
      // Predicated region
      $region29: #{tpu_custom_call.1} parent=5 // pred_check
        _
      $region30: #{tpu_custom_call.1} parent=5 // pred_check_branch
        %208 = sbr.rel (%p205) target = $region32
      $region31: #{tpu_custom_call.1} parent=5 // pred_region
        %s209 = ssub.s32 %s16, 1
        // Predicated region
        $region33: #{tpu_custom_call.1} parent=31 // pred_check
          %p210 = pneg %p49
        $region34: #{tpu_custom_call.1} parent=31 // pred_check_branch
          %212 = sbr.rel (%p210) target = $region36
        $region35: #{tpu_custom_call.1} parent=31 // pred_region
          %214 = dma.done [#allocation3], 48
        $region36: #{tpu_custom_call.1} parent=31 // pred_fallthru
          _
        %s215 = sand.u32 %s21, 1
        %s216 = scalar_lea.sflag [#allocation6], %s215
        %s217 = sand.u32 %s64, 1
        %s218 = smul.addr %s217, 64
        %s219 = scalar_lea.vmem [#allocation5], %s218
        // Predicated region
        $region37: #{tpu_custom_call.1} parent=31 // pred_check
          %p220 = pneg %p77
        $region38: #{tpu_custom_call.1} parent=31 // pred_check_branch
          %222 = sbr.rel (%p220) target = $region40
        $region39: #{tpu_custom_call.1} parent=31 // pred_region
          %224 = dma.done %s216, 1024
        $region40: #{tpu_custom_call.1} parent=31 // pred_fallthru
          _
        %s225 = sand.u32 %s21, 1
        %s226 = scalar_lea.sflag [#allocation6], %s225
        %s227 = sand.u32 %s90, 1
        %s228 = smul.addr %s227, 2
        %s229 = scalar_lea.vmem [#allocation7], %s228
        // Predicated region
        $region41: #{tpu_custom_call.1} parent=31 // pred_check
          %p230 = pneg %p103
        $region42: #{tpu_custom_call.1} parent=31 // pred_check_branch
          %232 = sbr.rel (%p230) target = $region44
        $region43: #{tpu_custom_call.1} parent=31 // pred_region
          %234 = dma.done %s226, 32
        $region44: #{tpu_custom_call.1} parent=31 // pred_fallthru
          _
        %p235 = pneg %p49
        %p236 = pneg %p46
        %s237 = sand.u32 %s21, 1
        %s238 = scalar_lea.sflag [#allocation6], %s237
        %s239 = sand.u32 %s64, 1
        %s240 = smul.addr %s239, 64
        %s241 = scalar_lea.vmem [#allocation5], %s240
        %p242 = pneg %p77
        %p243 = pneg %p74
        %s244 = sand.u32 %s21, 1
        %s245 = scalar_lea.sflag [#allocation6], %s244
        %s246 = sand.u32 %s90, 1
        %s247 = smul.addr %s246, 2
        %s248 = scalar_lea.vmem [#allocation7], %s247
        %p249 = pneg %p103
        %p250 = pneg %p100
        %p251 = pneg %p129
        %p252 = pneg %p126
        %s253 = sand.u32 %s116, 1
        %s254 = scalar_lea.sflag [#allocation4], %s253
        %s255 = sand.u32 %s116, 1
        %s256 = smul.addr %s255, 2
        %s257 = scalar_lea.vmem [#allocation8], %s256
        %s258 = smul.u32 16, %s26
        %p259 = scmp.eq.s32.totalorder %s26, 0
        // Predicated region
        $region45: #{tpu_custom_call.1} parent=31 // pred_check
          %p260 = pneg %p259
        $region46: #{tpu_custom_call.1} parent=31 // pred_check_branch
          %262 = sbr.rel (%p260) target = $region48
        $region47: #{tpu_custom_call.1} parent=31 // pred_region
          %263 = vst [vmem:[%s257] sm:$0x3] 0.0
        $region48: #{tpu_custom_call.1} parent=31 // pred_fallthru
          _
        %s264 = smul.u32 %s26, 128
        %s265 = sshra.s32 %s264, 7
        %s266 = sand.u32 %s264, 127
        %s267 = scalar_lea.vmem [#allocation2], %s265
        %v268 = vld [vmem:[%s267] sm:$0x1]
        %v269 = vld [vmem:[%s257] sm:$0x3]
        %v270 = vld [vmem:[%s219] sm:$0xf]
        %v271 = vld [vmem:[%s219 + $0x4] sm:$0xf]
        %v272 = vld [vmem:[%s219 + $0x8] sm:$0xf]
        %v273 = vld [vmem:[%s219 + $0xc] sm:$0xf]
        %v274 = vld [vmem:[%s219 + $0x10] sm:$0xf]
        %v275 = vld [vmem:[%s219 + $0x14] sm:$0xf]
        %v276 = vld [vmem:[%s219 + $0x18] sm:$0xf]
        %v277 = vld [vmem:[%s219 + $0x1c] sm:$0xf]
        %v278 = vld [vmem:[%s219 + $0x20] sm:$0xf]
        %v279 = vld [vmem:[%s219 + $0x24] sm:$0xf]
        %v280 = vld [vmem:[%s219 + $0x28] sm:$0xf]
        %v281 = vld [vmem:[%s219 + $0x2c] sm:$0xf]
        %v282 = vld [vmem:[%s219 + $0x30] sm:$0xf]
        %v283 = vld [vmem:[%s219 + $0x34] sm:$0xf]
        %v284 = vld [vmem:[%s219 + $0x38] sm:$0xf]
        %v285 = vld [vmem:[%s219 + $0x3c] sm:$0xf]
        %v302 = vunpack.c.l.b16 %v270
        %v303 = vunpack.c.l.b16 %v271
        %v304 = vunpack.c.l.b16 %v272
        %v305 = vunpack.c.l.b16 %v273
        %v306 = vunpack.c.l.b16 %v274
        %v307 = vunpack.c.l.b16 %v275
        %v308 = vunpack.c.l.b16 %v276
        %v309 = vunpack.c.l.b16 %v277
        %v310 = vunpack.c.l.b16 %v278
        %v311 = vunpack.c.l.b16 %v279
        %v312 = vunpack.c.l.b16 %v280
        %v313 = vunpack.c.l.b16 %v281
        %v314 = vunpack.c.l.b16 %v282
        %v315 = vunpack.c.l.b16 %v283
        %v316 = vunpack.c.l.b16 %v284
        %v317 = vunpack.c.l.b16 %v285
        %v318 = vpack.c.b16 %v303, %v302
        %v319 = vpack.c.b16 %v305, %v304
        %v320 = vpack.c.b16 %v307, %v306
        %v321 = vpack.c.b16 %v309, %v308
        %v322 = vpack.c.b16 %v311, %v310
        %v323 = vpack.c.b16 %v313, %v312
        %v324 = vpack.c.b16 %v315, %v314
        %v325 = vpack.c.b16 %v317, %v316
        %334 = vmatpush.bf16.msra.mxu0 %v325
        %335 = vmatpush.bf16.msra.mxu0 %v324
        %336 = vmatpush.bf16.msra.mxu0 %v323
        %337 = vmatpush.bf16.msra.mxu0 %v322
        %338 = vmatpush.bf16.msra.mxu0 %v321
        %339 = vmatpush.bf16.msra.mxu0 %v320
        %340 = vmatpush.bf16.msra.mxu0 %v319
        %341 = vmatpush.bf16.msra.mxu0 %v318
        %342 = vmatmul.bf16.gmra.mxu0 %v268
        %v343 = vpop.f32.mrf.mxu0
        %v344 = vadd.f32 0.0, %v343
        %v345 = vpop.f32.mrf.mxu0
        %346 = vdwg.mxu0
        %v347 = vadd.f32 %v269, %v344
        %348 = vst [vmem:[%s257] sm:$0x3] %v347
        %p349 = scmp.eq.s32.totalorder %s26, 2
        // Predicated region
        $region49: #{tpu_custom_call.1} parent=31 // pred_check
          %p350 = pneg %p349
        $region50: #{tpu_custom_call.1} parent=31 // pred_check_branch
          %352 = sbr.rel (%p350) target = $region52
        $region51: #{tpu_custom_call.1} parent=31 // pred_region
          %v353 = vld [vmem:[%s257] sm:$0x3]
          %v354 = vsub.f32 0.0, %v353
          %v355 = vmul.f32 %v354, 1.442695
          %v356 = vpow.pop %v355
          %v357 = vmul.f32 %v356, 10000.0
          %v358 = vld [vmem:[%s229] sm:$0x3]
          %v359 = vmul.f32 %v358, %v353
          %v360 = vadd.f32 %v357, %v359
          %361 = vst [vmem:[%s257] sm:$0x3] %v360
        $region52: #{tpu_custom_call.1} parent=31 // pred_fallthru
          _
        %s362 = sand.u32 %s116, 1
        %s363 = scalar_lea.sflag [#allocation4], %s362
        %s364 = sand.u32 %s116, 1
        %s365 = smul.addr %s364, 2
        %s366 = scalar_lea.vmem [#allocation8], %s365
        // Predicated region
        $region53: #{tpu_custom_call.1} parent=31 // pred_check
          %p367 = pneg %p126
        $region54: #{tpu_custom_call.1} parent=31 // pred_check_branch
          %369 = sbr.rel (%p367) target = $region56
        $region55: #{tpu_custom_call.1} parent=31 // pred_region
          %371 = vsyncadd %s363, 0
          %s372 = smul.addr %s25, 2
          %s373 = scalar_lea.hbm %s3, %s372
          %s375 = sshll.u32 %s366, 4
          %s376 = int_to_ptr.vmem [resolvable:$true] %s375
          %s377 = sshll.u32 %s373, 4
          %s378 = int_to_ptr.hbm [resolvable:$true] %s377
          %380 = dma.vmem_to_hbm [thread:$0]  %s376, 32, %s378, %s363
        $region56: #{tpu_custom_call.1} parent=31 // pred_fallthru
          _
      $region32: #{tpu_custom_call.1} parent=5 // pred_fallthru
        _
      %p381 = scmp.le.s32.totalorder 2, %s16
      // Predicated region
      $region57: #{tpu_custom_call.1} parent=5 // pred_check
        %p382 = pneg %p381
      $region58: #{tpu_custom_call.1} parent=5 // pred_check_branch
        %384 = sbr.rel (%p382) target = $region60
      $region59: #{tpu_custom_call.1} parent=5 // pred_region
        %s385 = ssub.s32 %s16, 2
        // Predicated region
        $region61: #{tpu_custom_call.1} parent=59 // pred_check
          %p386 = pneg %p132
        $region62: #{tpu_custom_call.1} parent=59 // pred_check_branch
          %388 = sbr.rel (%p386) target = $region64
        $region63: #{tpu_custom_call.1} parent=59 // pred_region
          %s389 = sand.u32 %s117, 1
          %s390 = scalar_lea.sflag [#allocation4], %s389
          %s391 = sand.u32 %s117, 1
          %s392 = smul.addr %s391, 2
          %s393 = scalar_lea.vmem [#allocation8], %s392
          %395 = dma.done %s390, 32
        $region64: #{tpu_custom_call.1} parent=59 // pred_fallthru
          _
      $region60: #{tpu_custom_call.1} parent=5 // pred_fallthru
        _
    $region6: #{tpu_custom_call.1} parent=1 // loop_footer
      %s20 = sadd.s32 1, %s16
    $region7: #{tpu_custom_call.1} parent=1 // loop_footer_branch
      %15 = sbr.rel target = $region3
    $region8: #{tpu_custom_call.1} parent=1 // loop_exit
      _
    %396 = vsyncpa [#allocation3], 1
    %s397 = scalar_lea.sflag [#allocation3], 1
    %398 = vsyncpa %s397, 1
    %399 = vsyncpa [#allocation6], 1
    %s400 = scalar_lea.sflag [#allocation6], 1
    %401 = vsyncpa %s400, 1
    %402 = vsyncpa [#allocation4], 1
    %s403 = scalar_lea.sflag [#allocation4], 1
    %404 = vsyncpa %s403, 1

</llo_original>
